<compile_context>
chip_gen: v5e
topology: v5e:2x2
jax: 0.10.0
libtpu: 0.0.40
codegen_flags: <defaults>
</compile_context>

<pallas_src>
import functools

import jax
import jax.numpy as jnp
from jax.experimental import pallas as pl
from jax.experimental.pallas import tpu as pltpu


# --------------------------------------------------------------------------------------
# Generation / VMEM detection (trace-time Python, never traced)
# --------------------------------------------------------------------------------------
def _device_kind():
    try:
        return jax.devices()[0].device_kind.lower()
    except Exception:
        return ""


def _generation(kind):
    if "v7" in kind:
        return "v7x"
    if "v6" in kind:
        return "v6e"
    if "v5" in kind:
        return "v5e"
    return "other"


def _vmem_capacity_bytes(kind):
    try:
        cap = getattr(pltpu.get_tpu_info(), "vmem_capacity_bytes", None)
        if cap:
            return int(cap)
    except Exception:
        pass
    gen = _generation(kind)
    if gen in ("v5e", "v6e"):
        return 128 << 20
    return 64 << 20  # v7x per-TC / conservative default


def _gate_dtype(kind):
    # bf16 VPU/EUP exists on v6e/v7x; v5e (and unknown) keep f32 gating.
    return jnp.bfloat16 if _generation(kind) in ("v6e", "v7x") else jnp.float32


def _round_up(x, m):
    return ((x + m - 1) // m) * m


def _pick_block_h(hidden, target):
    """Largest multiple-of-128 divisor of `hidden` not exceeding `target`
    (falls back to the full hidden dim if none divides evenly)."""
    if hidden <= target:
        return hidden
    target = max(128, (target // 128) * 128)
    for cand in range(target, 0, -128):
        if hidden % cand == 0:
            return cand
    return hidden


# --------------------------------------------------------------------------------------
# VMEM working-set estimates (bytes)
# --------------------------------------------------------------------------------------
def _fused_vmem_bytes(dim, hidden, bm):
    w13 = 2 * (dim * 2 * hidden * 2)          # bf16, double-buffered
    w2 = 2 * (hidden * dim * 2)               # bf16, double-buffered
    xio = 2 * bm * dim * 4 + 2 * bm * dim * 4  # f32 in + f32 out, double-buffered
    inter = bm * 2 * hidden * 4 + bm * hidden * 4 + bm * hidden * 2
    return w13 + w2 + xio + inter


def _tiled_vmem_bytes(dim, bm, bh):
    xio = 2 * bm * dim * 4 + 2 * bm * dim * 4
    acc = bm * dim * 4
    w13 = 2 * (dim * bh * 2) * 2              # two bf16 slices, double-buffered
    w2 = 2 * (bh * dim * 2)
    inter = 3 * bm * bh * 4                   # h1, h3, gate (worst case f32)
    return xio + acc + w13 + w2 + inter


# --------------------------------------------------------------------------------------
# Kernels
# --------------------------------------------------------------------------------------
def _ffn_fused_kernel(x_ref, w13_ref, w2_ref, o_ref, *, gate_dtype):
    """Weight-resident path: full hidden dim in one step, no accumulator."""
    hidden = w13_ref.shape[1] // 2
    x = x_ref[...].astype(jnp.bfloat16)                      # in-kernel cast (VPU filler)
    h = jnp.dot(x, w13_ref[...], preferred_element_type=jnp.float32)
    h1 = h[:, :hidden].astype(gate_dtype)
    h3 = h[:, hidden:].astype(gate_dtype)
    g = (h1 * jax.nn.sigmoid(h1)) * h3                       # SiLU gate (EUP sigmoid)
    out = jnp.dot(g.astype(jnp.bfloat16), w2_ref[...],
                  preferred_element_type=jnp.float32)
    o_ref[...] = out.astype(o_ref.dtype)


def _ffn_tiled_kernel(x_ref, w1_ref, w3_ref, w2_ref, o_ref, acc_ref, *, gate_dtype):
    """Hidden-axis reduction path (hidden tiled into bh-wide slices)."""
    hk = pl.program_id(1)

    @pl.when(hk == 0)
    def _():
        acc_ref[...] = jnp.zeros_like(acc_ref)

    x = x_ref[...].astype(jnp.bfloat16)
    h1 = jnp.dot(x, w1_ref[...], preferred_element_type=jnp.float32).astype(gate_dtype)
    h3 = jnp.dot(x, w3_ref[...], preferred_element_type=jnp.float32).astype(gate_dtype)
    g = (h1 * jax.nn.sigmoid(h1)) * h3
    acc_ref[...] += jnp.dot(g.astype(jnp.bfloat16), w2_ref[...],
                            preferred_element_type=jnp.float32)

    @pl.when(hk == pl.num_programs(1) - 1)
    def _():
        o_ref[...] = acc_ref[...].astype(o_ref.dtype)


# --------------------------------------------------------------------------------------
# Wrapper
# --------------------------------------------------------------------------------------
@functools.partial(jax.jit, static_argnames=("block_m", "block_h"))
def feed_forward(x, w13t, w2t, *, block_m=None, block_h=None):
    """x: (B, S, dim) f32/bf16;  w13t: (dim, 2*hidden) bf16 = [w1.T | w3.T];
    w2t: (hidden, dim) bf16 = w2.T."""
    B, S, dim = x.shape
    hidden = w13t.shape[1] // 2
    M = B * S

    kind = _device_kind()
    gen = _generation(kind)
    gate_dtype = _gate_dtype(kind)
    vmem_cap = _vmem_capacity_bytes(kind)
    vmem_limit = max(32 << 20, vmem_cap - (16 << 20))   # leave headroom for Mosaic scratch
    budget = int(vmem_limit * 0.75)

    # --- block_m: generation-aware defaults, clamped to the problem ---------------------
    if block_m is None:
        bm = {"v5e": 384, "v6e": 512, "v7x": 512}.get(gen, 512)
    else:
        bm = block_m
    bm = min(bm, _round_up(M, 8))
    # v7x: 2 TensorCores per chip — make sure the "parallel" M axis has >=2 tiles.
    if gen == "v7x" and M > 8 and pl.cdiv(M, bm) < 2:
        bm = max(8, _round_up(pl.cdiv(M, 2), 8))

    # --- block_h: weight-resident fast path if it fits, else tiled ----------------------
    if block_h is None:
        if _fused_vmem_bytes(dim, hidden, bm) <= budget:
            bh = hidden
        else:
            bh_target = 256 if gen == "v7x" else 512
            bh = _pick_block_h(hidden, bh_target)
    else:
        bh = _pick_block_h(hidden, min(block_h, hidden))

    # Guard the VMEM budget on the tiled path (shrink bh, then bm).
    if bh < hidden:
        while _tiled_vmem_bytes(dim, bm, bh) > budget:
            if bh > 128 and hidden % 128 == 0:
                new_bh = _pick_block_h(hidden, max(128, bh // 2))
                if new_bh < bh:
                    bh = new_bh
                    continue
            if bm > 256:
                bm = max(256, bm // 2)
                continue
            break

    x2d = x.reshape(M, dim)   # no wrapper-side dtype cast; kernel casts to bf16
    compiler_params = pltpu.CompilerParams(
        dimension_semantics=("parallel",) if bh == hidden else ("parallel", "arbitrary"),
        vmem_limit_bytes=vmem_limit,
    )

    if bh == hidden:
        # Weight-resident fast path: grid over M only, weights DMA'd once, no accumulator.
        out2d = pl.pallas_call(
            functools.partial(_ffn_fused_kernel, gate_dtype=gate_dtype),
            out_shape=jax.ShapeDtypeStruct((M, dim), x.dtype),
            grid_spec=pltpu.PrefetchScalarGridSpec(
                num_scalar_prefetch=0,
                grid=(pl.cdiv(M, bm),),
                in_specs=[
                    pl.BlockSpec((bm, dim), lambda i: (i, 0)),
                    pl.BlockSpec((dim, 2 * hidden), lambda i: (0, 0)),
                    pl.BlockSpec((hidden, dim), lambda i: (0, 0)),
                ],
                out_specs=pl.BlockSpec((bm, dim), lambda i: (i, 0)),
            ),
            compiler_params=compiler_params,
        )(x2d, w13t, w2t)
    else:
        n_h = hidden // bh
        out2d = pl.pallas_call(
            functools.partial(_ffn_tiled_kernel, gate_dtype=gate_dtype),
            out_shape=jax.ShapeDtypeStruct((M, dim), x.dtype),
            grid_spec=pltpu.PrefetchScalarGridSpec(
                num_scalar_prefetch=0,
                grid=(pl.cdiv(M, bm), n_h),
                in_specs=[
                    # x tile resident across the hidden (reduction) axis.
                    pl.BlockSpec((bm, dim), lambda i, h: (i, 0)),
                    # w1 half / w3 half are column slices of the same concatenated tensor.
                    pl.BlockSpec((dim, bh), lambda i, h: (0, h)),
                    pl.BlockSpec((dim, bh), lambda i, h: (0, n_h + h)),
                    pl.BlockSpec((bh, dim), lambda i, h: (h, 0)),
                ],
                out_specs=pl.BlockSpec((bm, dim), lambda i, h: (i, 0)),
                scratch_shapes=[pltpu.VMEM((bm, dim), jnp.float32)],
            ),
            compiler_params=compiler_params,
        )(x2d, w13t, w13t, w2t)

    return out2d.reshape(B, S, dim)


# --------------------------------------------------------------------------------------
# Params / reference
# --------------------------------------------------------------------------------------
def make_params(key, dim, hidden_dim, multiple_of):
    """Replicates FeedForward.__init__ hidden-dim arithmetic; returns weights already
    transposed, with w1/w3 concatenated into one tensor (deployment layout), bf16."""
    hidden = int(2 * hidden_dim / 3)
    hidden = multiple_of * ((hidden + multiple_of - 1) // multiple_of)
    k1, k2, k3 = jax.random.split(key, 3)
    w1t = (jax.random.normal(k1, (dim, hidden), jnp.float32)
           / jnp.sqrt(dim)).astype(jnp.bfloat16)     # == w1.T
    w3t = (jax.random.normal(k3, (dim, hidden), jnp.float32)
           / jnp.sqrt(dim)).astype(jnp.bfloat16)     # == w3.T
    w2t = (jax.random.normal(k2, (hidden, dim), jnp.float32)
           / jnp.sqrt(hidden)).astype(jnp.bfloat16)  # == w2.T
    w13t = jnp.concatenate([w1t, w3t], axis=1)       # (dim, 2*hidden)
    return w13t, w2t, hidden


def reference(x, w13t, w2t, gate_dtype):
    """Pure-JAX reference with the same bf16-operand / f32-accumulate / gate-dtype recipe."""
    B, S, dim = x.shape
    hidden = w13t.shape[1] // 2
    xb = x.reshape(-1, dim).astype(jnp.bfloat16)
    h = jnp.dot(xb, w13t, preferred_element_type=jnp.float32)
    h1 = h[:, :hidden].astype(gate_dtype)
    h3 = h[:, hidden:].astype(gate_dtype)
    g = (h1 * jax.nn.sigmoid(h1)) * h3
    out = jnp.dot(g.astype(jnp.bfloat16), w2t, preferred_element_type=jnp.float32)
    return out.reshape(B, S, dim).astype(x.dtype)


if __name__ == "__main__":
    key = jax.random.PRNGKey(0)
    k_x, k_w = jax.random.split(key)

    # Small but lane-dense shapes: dim and hidden are multiples of 128.
    B, S = 2, 8
    dim = 128
    hidden_dim_arg = 384   # -> int(2*384/3)=256 -> rounded to multiple_of=128 -> 256
    multiple_of = 128

    w13t, w2t, hidden = make_params(k_w, dim, hidden_dim_arg, multiple_of)
    x = jax.random.normal(k_x, (B, S, dim), jnp.float32)

    gate_dtype = _gate_dtype(_device_kind())
    ref = reference(x, w13t, w2t, gate_dtype)

    # 1) Auto path (weights fit VMEM at this size -> fused, weight-resident kernel).
    out_fast = jax.block_until_ready(feed_forward(x, w13t, w2t))
    assert out_fast.shape == (B, S, dim)
    assert jnp.allclose(out_fast, ref, atol=2e-2, rtol=2e-2), (
        f"fast path max err {jnp.max(jnp.abs(out_fast - ref))}")

    # 2) Forced tiled path (hidden split into 2 blocks, 2 M tiles) — exercises the
    #    reduction kernel with the f32 accumulator scratch.
    out_tiled = jax.block_until_ready(feed_forward(x, w13t, w2t, block_m=8, block_h=128))
    assert jnp.allclose(out_tiled, ref, atol=2e-2, rtol=2e-2), (
        f"tiled path max err {jnp.max(jnp.abs(out_tiled - ref))}")

    print("KERNEL_OK")
</pallas_src>

<mosaic_0001>
module attributes {stable_mosaic.version = 11 : i64} {
  func.func @_ffn_fused_kernel(%arg0: i32, %arg1: memref<16x128xf32, #tpu.memory_space<vmem>>, %arg2: memref<128x512xbf16, #tpu.memory_space<vmem>>, %arg3: memref<256x128xbf16, #tpu.memory_space<vmem>>, %arg4: memref<16x128xf32, #tpu.memory_space<vmem>>) attributes {dimension_semantics = [#tpu.dimension_semantics<parallel>], iteration_bounds = array<i64: 1>, scalar_prefetch = 0 : i64, scratch_operands = 0 : i64, tpu.core_type = #tpu.core_type<tc>, window_params = [{transform_indices = @transform_0, window_bounds = array<i64: 16, 128>}, {pipeline_mode = #tpu.pipeline_mode<synchronous>, transform_indices = @transform_1, window_bounds = array<i64: 128, 512>}, {pipeline_mode = #tpu.pipeline_mode<synchronous>, transform_indices = @transform_2, window_bounds = array<i64: 256, 128>}, {transform_indices = @transform_3, window_bounds = array<i64: 16, 128>}]} {
    %c0 = arith.constant 0 : index
    %c0_0 = arith.constant 0 : index
    %0 = vector.load %arg1[%c0, %c0_0] : memref<16x128xf32, #tpu.memory_space<vmem>>, vector<16x128xf32>
    %1 = arith.truncf %0 : vector<16x128xf32> to vector<16x128xbf16>
    %c0_1 = arith.constant 0 : index
    %c0_2 = arith.constant 0 : index
    %2 = vector.load %arg2[%c0_1, %c0_2] : memref<128x512xbf16, #tpu.memory_space<vmem>>, vector<128x512xbf16>
    %cst = arith.constant dense<0.000000e+00> : vector<16x512xf32>
    %3 = tpu.matmul %1, %2, %cst {dimension_numbers = #tpu.dot_dimension_numbers<[1], [0], [0], [1], [0, 0, 1, 1], [], []>} : vector<16x128xbf16>, vector<128x512xbf16>, vector<16x512xf32> -> vector<16x512xf32>
    %4 = vector.extract_strided_slice %3 {offsets = [0, 0], sizes = [16, 256], strides = [1, 1]} : vector<16x512xf32> to vector<16x256xf32>
    %5 = vector.extract_strided_slice %3 {offsets = [0, 256], sizes = [16, 256], strides = [1, 1]} : vector<16x512xf32> to vector<16x256xf32>
    %6 = arith.negf %4 : vector<16x256xf32>
    %7 = math.exp %6 : vector<16x256xf32>
    %cst_3 = arith.constant 1.000000e+00 : f32
    %8 = vector.broadcast %cst_3 : f32 to vector<16x256xf32>
    %9 = arith.addf %8, %7 : vector<16x256xf32>
    %10 = arith.divf %8, %9 : vector<16x256xf32>
    %11 = arith.mulf %4, %10 : vector<16x256xf32>
    %12 = arith.mulf %11, %5 : vector<16x256xf32>
    %13 = arith.truncf %12 : vector<16x256xf32> to vector<16x256xbf16>
    %c0_4 = arith.constant 0 : index
    %c0_5 = arith.constant 0 : index
    %14 = vector.load %arg3[%c0_4, %c0_5] : memref<256x128xbf16, #tpu.memory_space<vmem>>, vector<256x128xbf16>
    %cst_6 = arith.constant dense<0.000000e+00> : vector<16x128xf32>
    %15 = tpu.matmul %13, %14, %cst_6 {dimension_numbers = #tpu.dot_dimension_numbers<[1], [0], [0], [1], [0, 0, 1, 1], [], []>} : vector<16x256xbf16>, vector<256x128xbf16>, vector<16x128xf32> -> vector<16x128xf32>
    %c0_7 = arith.constant 0 : index
    %c0_8 = arith.constant 0 : index
    %16 = vector.load %arg4[%c0_7, %c0_8] : memref<16x128xf32, #tpu.memory_space<vmem>>, vector<16x128xf32>
    tpu.vector_store %arg4[%c0_7, %c0_8], %15 {strides = array<i32>} : memref<16x128xf32, #tpu.memory_space<vmem>>, vector<16x128xf32>,
    return
  }
  func.func @transform_0(%arg0: i32) -> (i32, i32) {
    %c0_i32 = arith.constant 0 : i32
    %c0_i32_0 = arith.constant 0 : i32
    return %arg0, %c0_i32 : i32, i32
  }
  func.func @transform_1(%arg0: i32) -> (i32, i32) {
    %c0_i32 = arith.constant 0 : i32
    %c0_i32_0 = arith.constant 0 : i32
    %c0_i32_1 = arith.constant 0 : i32
    return %c0_i32, %c0_i32_0 : i32, i32
  }
  func.func @transform_2(%arg0: i32) -> (i32, i32) {
    %c0_i32 = arith.constant 0 : i32
    %c0_i32_0 = arith.constant 0 : i32
    %c0_i32_1 = arith.constant 0 : i32
    return %c0_i32, %c0_i32_0 : i32, i32
  }
  func.func @transform_3(%arg0: i32) -> (i32, i32) {
    %c0_i32 = arith.constant 0 : i32
    %c0_i32_0 = arith.constant 0 : i32
    return %arg0, %c0_i32 : i32, i32
  }
}

</mosaic_0001>

<llo_original>
// kernel: feed_forward.1
$region0: #{feed_forward.1}
  #allocation0 [shape = 'u32[]', space=smem, size = 0x4, offset = 0x4, fixed_abs, tag = 'smem constant byte address 0x4 - core index']
  #allocation1 [shape = 'u32[72,128]{1,0:T(1,128)}', space=vmem, size = 0x9000, scoped, tag = 'internal scratch']
  %s0 = inlined_call_operand.hbm [shape: f32[16,128], index: 0, kind: input, shape index: {}]
  %s1 = inlined_call_operand.hbm [shape: bf16[128,512], index: 1, kind: input, shape index: {}]
  %s2 = inlined_call_operand.hbm [shape: bf16[256,128], index: 2, kind: input, shape index: {}]
  %s3 = inlined_call_operand.hbm [shape: f32[16,128], index: 3, kind: output, shape index: {}]
  %s4 = sld [smem:[#allocation0]]
  $region34: #{feed_forward.1} parent=0
    _
  %s6 = ssub.s32 1, %s4
  %s7 = scalar_select 0, %s6, %s4
  $region1: #{feed_forward.1} parent=0
    #allocation2 [shape = 'u8[8192]{0}', space=vmem, size = 0x2000, scoped, tag = 'input window, operand 0, single buffered']
    #allocation3 [shape = 's32[1]{0}', space=sflag, size = 0x4, scoped, tag = 'scoped memory for feed_forward.1']
    #allocation4 [shape = 's32[1]{0}', space=sflag, size = 0x4, scoped, tag = 'scoped memory for feed_forward.1']
    #allocation5 [shape = 'u8[131072]{0}', space=vmem, size = 0x20000, scoped, tag = 'input window, operand 1, single buffered']
    #allocation6 [shape = 's32[1]{0}', space=sflag, size = 0x4, scoped, tag = 'scoped memory for feed_forward.1']
    #allocation7 [shape = 'u8[65536]{0}', space=vmem, size = 0x10000, scoped, tag = 'input window, operand 2, single buffered']
    #allocation8 [shape = 'u8[8192]{0}', space=vmem, size = 0x2000, scoped, tag = 'output window, operand 0, single buffered']
    %8 = vsyncpa [#allocation3], 0
    %9 = vsyncpa [#allocation6], 0
    %10 = vsyncpa [#allocation4], 0
    // Predicated region
    $region2: #{feed_forward.1} parent=1 // pred_check
      _
    $region3: #{feed_forward.1} parent=1 // pred_check_branch
      %12 = sbr.rel (0) target = $region5
    $region4: #{feed_forward.1} parent=1 // pred_region
      %14 = vsyncadd [#allocation3], 0
      %s15 = sshll.u32 %s0, 4
      %s16 = int_to_ptr.hbm [resolvable:$true] %s15
      %s17 = sshll.u32 [#allocation2], 4
      %s18 = int_to_ptr.vmem [resolvable:$true] %s17
      %23 = dma.hbm_to_vmem [thread:$0]  %s16, 256, %s18, [#allocation3], 128, 128, 8
    $region5: #{feed_forward.1} parent=1 // pred_fallthru
      _
    // Predicated region
    $region6: #{feed_forward.1} parent=1 // pred_check
      _
    $region7: #{feed_forward.1} parent=1 // pred_check_branch
      %25 = sbr.rel (0) target = $region9
    $region8: #{feed_forward.1} parent=1 // pred_region
      %27 = vsyncadd [#allocation6], 0
      %s28 = sshll.u32 %s1, 4
      %s29 = int_to_ptr.hbm [resolvable:$true] %s28
      %s30 = sshll.u32 [#allocation5], 4
      %s31 = int_to_ptr.vmem [resolvable:$true] %s30
      %36 = dma.hbm_to_vmem [thread:$0]  %s29, 4096, %s31, [#allocation6], 256, 256, 16
    $region9: #{feed_forward.1} parent=1 // pred_fallthru
      _
    // Predicated region
    $region10: #{feed_forward.1} parent=1 // pred_check
      _
    $region11: #{feed_forward.1} parent=1 // pred_check_branch
      %38 = sbr.rel (0) target = $region13
    $region12: #{feed_forward.1} parent=1 // pred_region
      %40 = vsyncadd [#allocation6], 0
      %s41 = sshll.u32 %s2, 4
      %s42 = int_to_ptr.hbm [resolvable:$true] %s41
      %s43 = sshll.u32 [#allocation7], 4
      %s44 = int_to_ptr.vmem [resolvable:$true] %s43
      %49 = dma.hbm_to_vmem [thread:$0]  %s42, 2048, %s44, [#allocation6], 64, 64, 4
    $region13: #{feed_forward.1} parent=1 // pred_fallthru
      _
    // Predicated region
    $region14: #{feed_forward.1} parent=1 // pred_check
      _
    $region15: #{feed_forward.1} parent=1 // pred_check_branch
      %51 = sbr.rel (0) target = $region17
    $region16: #{feed_forward.1} parent=1 // pred_region
      %53 = dma.done [#allocation3], 256
    $region17: #{feed_forward.1} parent=1 // pred_fallthru
      _
    // Predicated region
    $region18: #{feed_forward.1} parent=1 // pred_check
      _
    $region19: #{feed_forward.1} parent=1 // pred_check_branch
      %55 = sbr.rel (0) target = $region21
    $region20: #{feed_forward.1} parent=1 // pred_region
      %57 = dma.done [#allocation6], 4096
    $region21: #{feed_forward.1} parent=1 // pred_fallthru
      _
    // Predicated region
    $region22: #{feed_forward.1} parent=1 // pred_check
      _
    $region23: #{feed_forward.1} parent=1 // pred_check_branch
      %59 = sbr.rel (0) target = $region25
    $region24: #{feed_forward.1} parent=1 // pred_region
      %61 = dma.done [#allocation6], 2048
    $region25: #{feed_forward.1} parent=1 // pred_fallthru
      _
    %v62 = vld [vmem:[#allocation2] sm:$0xff]
    %v63 = vld [vmem:[#allocation2 + $0x8] sm:$0xff]
    %v64 = vpack.c.bf16 %v63, %v62
    %v65 = vld [vmem:[#allocation5] sm:$0xff]
    %v66 = vld [vmem:[#allocation5 + $0x8] sm:$0xff]
    %v67 = vld [vmem:[#allocation5 + $0x10] sm:$0xff]
    %v68 = vld [vmem:[#allocation5 + $0x18] sm:$0xff]
    %v69 = vld [vmem:[#allocation5 + $0x20] sm:$0xff]
    %v70 = vld [vmem:[#allocation5 + $0x28] sm:$0xff]
    %v71 = vld [vmem:[#allocation5 + $0x30] sm:$0xff]
    %v72 = vld [vmem:[#allocation5 + $0x38] sm:$0xff]
    %v73 = vld [vmem:[#allocation5 + $0x40] sm:$0xff]
    %v74 = vld [vmem:[#allocation5 + $0x48] sm:$0xff]
    %v75 = vld [vmem:[#allocation5 + $0x50] sm:$0xff]
    %v76 = vld [vmem:[#allocation5 + $0x58] sm:$0xff]
    %v77 = vld [vmem:[#allocation5 + $0x60] sm:$0xff]
    %v78 = vld [vmem:[#allocation5 + $0x68] sm:$0xff]
    %v79 = vld [vmem:[#allocation5 + $0x70] sm:$0xff]
    %v80 = vld [vmem:[#allocation5 + $0x78] sm:$0xff]
    %v81 = vld [vmem:[#allocation5 + $0x80] sm:$0xff]
    %v82 = vld [vmem:[#allocation5 + $0x88] sm:$0xff]
    %v83 = vld [vmem:[#allocation5 + $0x90] sm:$0xff]
    %v84 = vld [vmem:[#allocation5 + $0x98] sm:$0xff]
    %v85 = vld [vmem:[#allocation5 + $0xa0] sm:$0xff]
    %v86 = vld [vmem:[#allocation5 + $0xa8] sm:$0xff]
    %v87 = vld [vmem:[#allocation5 + $0xb0] sm:$0xff]
    %v88 = vld [vmem:[#allocation5 + $0xb8] sm:$0xff]
    %v89 = vld [vmem:[#allocation5 + $0xc0] sm:$0xff]
    %v90 = vld [vmem:[#allocation5 + $0xc8] sm:$0xff]
    %v91 = vld [vmem:[#allocation5 + $0xd0] sm:$0xff]
    %v92 = vld [vmem:[#allocation5 + $0xd8] sm:$0xff]
    %v93 = vld [vmem:[#allocation5 + $0xe0] sm:$0xff]
    %v94 = vld [vmem:[#allocation5 + $0xe8] sm:$0xff]
    %v95 = vld [vmem:[#allocation5 + $0xf0] sm:$0xff]
    %v96 = vld [vmem:[#allocation5 + $0xf8] sm:$0xff]
    %v129 = vunpack.c.l.b16 %v65
    %v130 = vunpack.c.h.b16 %v65
    %v131 = vunpack.c.l.b16 %v66
    %v132 = vunpack.c.h.b16 %v66
    %v133 = vunpack.c.l.b16 %v67
    %v134 = vunpack.c.h.b16 %v67
    %v135 = vunpack.c.l.b16 %v68
    %v136 = vunpack.c.h.b16 %v68
    %v137 = vunpack.c.l.b16 %v69
    %v138 = vunpack.c.h.b16 %v69
    %v139 = vunpack.c.l.b16 %v70
    %v140 = vunpack.c.h.b16 %v70
    %v141 = vunpack.c.l.b16 %v71
    %v142 = vunpack.c.h.b16 %v71
    %v143 = vunpack.c.l.b16 %v72
    %v144 = vunpack.c.h.b16 %v72
    %v145 = vunpack.c.l.b16 %v73
    %v146 = vunpack.c.h.b16 %v73
    %v147 = vunpack.c.l.b16 %v74
    %v148 = vunpack.c.h.b16 %v74
    %v149 = vunpack.c.l.b16 %v75
    %v150 = vunpack.c.h.b16 %v75
    %v151 = vunpack.c.l.b16 %v76
    %v152 = vunpack.c.h.b16 %v76
    %v153 = vunpack.c.l.b16 %v77
    %v154 = vunpack.c.h.b16 %v77
    %v155 = vunpack.c.l.b16 %v78
    %v156 = vunpack.c.h.b16 %v78
    %v157 = vunpack.c.l.b16 %v79
    %v158 = vunpack.c.h.b16 %v79
    %v159 = vunpack.c.l.b16 %v80
    %v160 = vunpack.c.h.b16 %v80
    %v161 = vunpack.c.l.b16 %v81
    %v162 = vunpack.c.h.b16 %v81
    %v163 = vunpack.c.l.b16 %v82
    %v164 = vunpack.c.h.b16 %v82
    %v165 = vunpack.c.l.b16 %v83
    %v166 = vunpack.c.h.b16 %v83
    %v167 = vunpack.c.l.b16 %v84
    %v168 = vunpack.c.h.b16 %v84
    %v169 = vunpack.c.l.b16 %v85
    %v170 = vunpack.c.h.b16 %v85
    %v171 = vunpack.c.l.b16 %v86
    %v172 = vunpack.c.h.b16 %v86
    %v173 = vunpack.c.l.b16 %v87
    %v174 = vunpack.c.h.b16 %v87
    %v175 = vunpack.c.l.b16 %v88
    %v176 = vunpack.c.h.b16 %v88
    %v177 = vunpack.c.l.b16 %v89
    %v178 = vunpack.c.h.b16 %v89
    %v179 = vunpack.c.l.b16 %v90
    %v180 = vunpack.c.h.b16 %v90
    %v181 = vunpack.c.l.b16 %v91
    %v182 = vunpack.c.h.b16 %v91
    %v183 = vunpack.c.l.b16 %v92
    %v184 = vunpack.c.h.b16 %v92
    %v185 = vunpack.c.l.b16 %v93
    %v186 = vunpack.c.h.b16 %v93
    %v187 = vunpack.c.l.b16 %v94
    %v188 = vunpack.c.h.b16 %v94
    %v189 = vunpack.c.l.b16 %v95
    %v190 = vunpack.c.h.b16 %v95
    %v191 = vunpack.c.l.b16 %v96
    %v192 = vunpack.c.h.b16 %v96
    %v193 = vpack.c.b16 %v133, %v129
    %v194 = vpack.c.b16 %v134, %v130
    %v195 = vpack.c.b16 %v135, %v131
    %v196 = vpack.c.b16 %v136, %v132
    %v197 = vpack.c.b16 %v141, %v137
    %v198 = vpack.c.b16 %v142, %v138
    %v199 = vpack.c.b16 %v143, %v139
    %v200 = vpack.c.b16 %v144, %v140
    %v201 = vpack.c.b16 %v149, %v145
    %v202 = vpack.c.b16 %v150, %v146
    %v203 = vpack.c.b16 %v151, %v147
    %v204 = vpack.c.b16 %v152, %v148
    %v205 = vpack.c.b16 %v157, %v153
    %v206 = vpack.c.b16 %v158, %v154
    %v207 = vpack.c.b16 %v159, %v155
    %v208 = vpack.c.b16 %v160, %v156
    %v209 = vpack.c.b16 %v165, %v161
    %v210 = vpack.c.b16 %v166, %v162
    %v211 = vpack.c.b16 %v167, %v163
    %v212 = vpack.c.b16 %v168, %v164
    %v213 = vpack.c.b16 %v173, %v169
    %v214 = vpack.c.b16 %v174, %v170
    %v215 = vpack.c.b16 %v175, %v171
    %v216 = vpack.c.b16 %v176, %v172
    %v217 = vpack.c.b16 %v181, %v177
    %v218 = vpack.c.b16 %v182, %v178
    %v219 = vpack.c.b16 %v183, %v179
    %v220 = vpack.c.b16 %v184, %v180
    %v221 = vpack.c.b16 %v189, %v185
    %v222 = vpack.c.b16 %v190, %v186
    %v223 = vpack.c.b16 %v191, %v187
    %v224 = vpack.c.b16 %v192, %v188
    %257 = vmatpush.bf16.msra.mxu0 %v221
    %258 = vmatpush.bf16.msra.mxu0 %v217
    %259 = vmatpush.bf16.msra.mxu0 %v213
    %260 = vmatpush.bf16.msra.mxu0 %v209
    %261 = vmatpush.bf16.msra.mxu0 %v205
    %262 = vmatpush.bf16.msra.mxu0 %v201
    %263 = vmatpush.bf16.msra.mxu0 %v197
    %264 = vmatpush.bf16.msra.mxu0 %v193
    %265 = vmatmul.bf16.gmra.mxu0 %v64
    %v266 = vpop.f32.mrf.mxu0
    %v267 = vadd.f32 0.0, %v266
    %v268 = vpop.f32.mrf.mxu0
    %v269 = vadd.f32 0.0, %v268
    %270 = vdwg.mxu0
    %271 = vmatpush.bf16.msra.mxu0 %v222
    %272 = vmatpush.bf16.msra.mxu0 %v218
    %273 = vmatpush.bf16.msra.mxu0 %v214
    %274 = vmatpush.bf16.msra.mxu0 %v210
    %275 = vmatpush.bf16.msra.mxu0 %v206
    %276 = vmatpush.bf16.msra.mxu0 %v202
    %277 = vmatpush.bf16.msra.mxu0 %v198
    %278 = vmatpush.bf16.msra.mxu0 %v194
    %279 = vmatmul.bf16.gmra.mxu0 %v64
    %v280 = vpop.f32.mrf.mxu0
    %v281 = vadd.f32 0.0, %v280
    %v282 = vpop.f32.mrf.mxu0
    %v283 = vadd.f32 0.0, %v282
    %284 = vdwg.mxu0
    %285 = vmatpush.bf16.msra.mxu0 %v223
    %286 = vmatpush.bf16.msra.mxu0 %v219
    %287 = vmatpush.bf16.msra.mxu0 %v215
    %288 = vmatpush.bf16.msra.mxu0 %v211
    %289 = vmatpush.bf16.msra.mxu0 %v207
    %290 = vmatpush.bf16.msra.mxu0 %v203
    %291 = vmatpush.bf16.msra.mxu0 %v199
    %292 = vmatpush.bf16.msra.mxu0 %v195
    %293 = vmatmul.bf16.gmra.mxu0 %v64
    %v294 = vpop.f32.mrf.mxu0
    %v295 = vadd.f32 0.0, %v294
    %v296 = vpop.f32.mrf.mxu0
    %v297 = vadd.f32 0.0, %v296
    %298 = vdwg.mxu0
    %299 = vmatpush.bf16.msra.mxu0 %v224
    %300 = vmatpush.bf16.msra.mxu0 %v220
    %301 = vmatpush.bf16.msra.mxu0 %v216
    %302 = vmatpush.bf16.msra.mxu0 %v212
    %303 = vmatpush.bf16.msra.mxu0 %v208
    %304 = vmatpush.bf16.msra.mxu0 %v204
    %305 = vmatpush.bf16.msra.mxu0 %v200
    %306 = vmatpush.bf16.msra.mxu0 %v196
    %307 = vmatmul.bf16.gmra.mxu0 %v64
    %v308 = vpop.f32.mrf.mxu0
    %v309 = vadd.f32 0.0, %v308
    %v310 = vpop.f32.mrf.mxu0
    %v311 = vadd.f32 0.0, %v310
    %312 = vdwg.mxu0
    %v313 = vxor.u32 %v267, 2147483648
    %v314 = vxor.u32 %v281, 2147483648
    %v315 = vxor.u32 %v269, 2147483648
    %v316 = vxor.u32 %v283, 2147483648
    %v317 = vmul.f32 %v313, 1.442695
    %v318 = vpow.pop %v317
    %v319 = vmul.f32 %v314, 1.442695
    %v320 = vpow.pop %v319
    %v321 = vmul.f32 %v315, 1.442695
    %v322 = vpow.pop %v321
    %v323 = vmul.f32 %v316, 1.442695
    %v324 = vpow.pop %v323
    %v325 = vadd.f32 %v318, 1.0
    %v326 = vadd.f32 %v320, 1.0
    %v327 = vadd.f32 %v322, 1.0
    %v328 = vadd.f32 %v324, 1.0
    %v329 = vrcp.pop %v325
    %v330 = vmul.f32 %v325, %v329
    %v331 = vsub.f32 1.0, %v330
    %v332 = vmul.f32 %v329, %v331
    %v333 = vadd.f32 %v329, %v332
    %vm334 = vweird.f32 %v325
    %vm335 = vweird.f32 %v329
    %vm336 = vmor %vm334, %vm335
    %v337 = vsel %vm336, %v329, %v333
    %v338 = vand.u32 2147483647, %v325
    %vm339 = vcmp.eq.f32.partialorder %v338, 8.507059e+37
    %v340 = vand.u32 %v325, 2147483648
    %v341 = vor.u32 1.1754944e-38, %v340
    %v342 = vsel %vm339, %v341, %v337
    %v343 = vmul.f32 1.0, %v342
    %v344 = vrcp.pop %v326
    %v345 = vmul.f32 %v326, %v344
    %v346 = vsub.f32 1.0, %v345
    %v347 = vmul.f32 %v344, %v346
    %v348 = vadd.f32 %v344, %v347
    %vm349 = vweird.f32 %v326
    %vm350 = vweird.f32 %v344
    %vm351 = vmor %vm349, %vm350
    %v352 = vsel %vm351, %v344, %v348
    %v353 = vand.u32 2147483647, %v326
    %vm354 = vcmp.eq.f32.partialorder %v353, 8.507059e+37
    %v355 = vand.u32 %v326, 2147483648
    %v356 = vor.u32 1.1754944e-38, %v355
    %v357 = vsel %vm354, %v356, %v352
    %v358 = vmul.f32 1.0, %v357
    %v359 = vrcp.pop %v327
    %v360 = vmul.f32 %v327, %v359
    %v361 = vsub.f32 1.0, %v360
    %v362 = vmul.f32 %v359, %v361
    %v363 = vadd.f32 %v359, %v362
    %vm364 = vweird.f32 %v327
    %vm365 = vweird.f32 %v359
    %vm366 = vmor %vm364, %vm365
    %v367 = vsel %vm366, %v359, %v363
    %v368 = vand.u32 2147483647, %v327
    %vm369 = vcmp.eq.f32.partialorder %v368, 8.507059e+37
    %v370 = vand.u32 %v327, 2147483648
    %v371 = vor.u32 1.1754944e-38, %v370
    %v372 = vsel %vm369, %v371, %v367
    %v373 = vmul.f32 1.0, %v372
    %v374 = vrcp.pop %v328
    %v375 = vmul.f32 %v328, %v374
    %v376 = vsub.f32 1.0, %v375
    %v377 = vmul.f32 %v374, %v376
    %v378 = vadd.f32 %v374, %v377
    %vm379 = vweird.f32 %v328
    %vm380 = vweird.f32 %v374
    %vm381 = vmor %vm379, %vm380
    %v382 = vsel %vm381, %v374, %v378
    %v383 = vand.u32 2147483647, %v328
    %vm384 = vcmp.eq.f32.partialorder %v383, 8.507059e+37
    %v385 = vand.u32 %v328, 2147483648
    %v386 = vor.u32 1.1754944e-38, %v385
    %v387 = vsel %vm384, %v386, %v382
    %v388 = vmul.f32 1.0, %v387
    %v389 = vmul.f32 %v267, %v343
    %v390 = vmul.f32 %v281, %v358
    %v391 = vmul.f32 %v269, %v373
    %v392 = vmul.f32 %v283, %v388
    %v393 = vmul.f32 %v389, %v295
    %v394 = vmul.f32 %v390, %v309
    %v395 = vmul.f32 %v391, %v297
    %v396 = vmul.f32 %v392, %v311
    %v397 = vpack.c.bf16 %v395, %v393
    %v398 = vpack.c.bf16 %v396, %v394
    %v399 = vld [vmem:[#allocation7] sm:$0xf]
    %v400 = vld [vmem:[#allocation7 + $0x4] sm:$0xf]
    %v401 = vld [vmem:[#allocation7 + $0x8] sm:$0xf]
    %v402 = vld [vmem:[#allocation7 + $0xc] sm:$0xf]
    %v403 = vld [vmem:[#allocation7 + $0x10] sm:$0xf]
    %v404 = vld [vmem:[#allocation7 + $0x14] sm:$0xf]
    %v405 = vld [vmem:[#allocation7 + $0x18] sm:$0xf]
    %v406 = vld [vmem:[#allocation7 + $0x1c] sm:$0xf]
    %v407 = vld [vmem:[#allocation7 + $0x20] sm:$0xf]
    %v408 = vld [vmem:[#allocation7 + $0x24] sm:$0xf]
    %v409 = vld [vmem:[#allocation7 + $0x28] sm:$0xf]
    %v410 = vld [vmem:[#allocation7 + $0x2c] sm:$0xf]
    %v411 = vld [vmem:[#allocation7 + $0x30] sm:$0xf]
    %v412 = vld [vmem:[#allocation7 + $0x34] sm:$0xf]
    %v413 = vld [vmem:[#allocation7 + $0x38] sm:$0xf]
    %v414 = vld [vmem:[#allocation7 + $0x3c] sm:$0xf]
    %v415 = vld [vmem:[#allocation7 + $0x40] sm:$0xf]
    %v416 = vld [vmem:[#allocation7 + $0x44] sm:$0xf]
    %v417 = vld [vmem:[#allocation7 + $0x48] sm:$0xf]
    %v418 = vld [vmem:[#allocation7 + $0x4c] sm:$0xf]
    %v419 = vld [vmem:[#allocation7 + $0x50] sm:$0xf]
    %v420 = vld [vmem:[#allocation7 + $0x54] sm:$0xf]
    %v421 = vld [vmem:[#allocation7 + $0x58] sm:$0xf]
    %v422 = vld [vmem:[#allocation7 + $0x5c] sm:$0xf]
    %v423 = vld [vmem:[#allocation7 + $0x60] sm:$0xf]
    %v424 = vld [vmem:[#allocation7 + $0x64] sm:$0xf]
    %v425 = vld [vmem:[#allocation7 + $0x68] sm:$0xf]
    %v426 = vld [vmem:[#allocation7 + $0x6c] sm:$0xf]
    %v427 = vld [vmem:[#allocation7 + $0x70] sm:$0xf]
    %v428 = vld [vmem:[#allocation7 + $0x74] sm:$0xf]
    %v429 = vld [vmem:[#allocation7 + $0x78] sm:$0xf]
    %v430 = vld [vmem:[#allocation7 + $0x7c] sm:$0xf]
    %v463 = vunpack.c.l.b16 %v399
    %v464 = vunpack.c.l.b16 %v400
    %v465 = vunpack.c.l.b16 %v401
    %v466 = vunpack.c.l.b16 %v402
    %v467 = vunpack.c.l.b16 %v403
    %v468 = vunpack.c.l.b16 %v404
    %v469 = vunpack.c.l.b16 %v405
    %v470 = vunpack.c.l.b16 %v406
    %v471 = vunpack.c.l.b16 %v407
    %v472 = vunpack.c.l.b16 %v408
    %v473 = vunpack.c.l.b16 %v409
    %v474 = vunpack.c.l.b16 %v410
    %v475 = vunpack.c.l.b16 %v411
    %v476 = vunpack.c.l.b16 %v412
    %v477 = vunpack.c.l.b16 %v413
    %v478 = vunpack.c.l.b16 %v414
    %v479 = vunpack.c.l.b16 %v415
    %v480 = vunpack.c.l.b16 %v416
    %v481 = vunpack.c.l.b16 %v417
    %v482 = vunpack.c.l.b16 %v418
    %v483 = vunpack.c.l.b16 %v419
    %v484 = vunpack.c.l.b16 %v420
    %v485 = vunpack.c.l.b16 %v421
    %v486 = vunpack.c.l.b16 %v422
    %v487 = vunpack.c.l.b16 %v423
    %v488 = vunpack.c.l.b16 %v424
    %v489 = vunpack.c.l.b16 %v425
    %v490 = vunpack.c.l.b16 %v426
    %v491 = vunpack.c.l.b16 %v427
    %v492 = vunpack.c.l.b16 %v428
    %v493 = vunpack.c.l.b16 %v429
    %v494 = vunpack.c.l.b16 %v430
    %v495 = vpack.c.b16 %v464, %v463
    %v496 = vpack.c.b16 %v466, %v465
    %v497 = vpack.c.b16 %v468, %v467
    %v498 = vpack.c.b16 %v470, %v469
    %v499 = vpack.c.b16 %v472, %v471
    %v500 = vpack.c.b16 %v474, %v473
    %v501 = vpack.c.b16 %v476, %v475
    %v502 = vpack.c.b16 %v478, %v477
    %v503 = vpack.c.b16 %v480, %v479
    %v504 = vpack.c.b16 %v482, %v481
    %v505 = vpack.c.b16 %v484, %v483
    %v506 = vpack.c.b16 %v486, %v485
    %v507 = vpack.c.b16 %v488, %v487
    %v508 = vpack.c.b16 %v490, %v489
    %v509 = vpack.c.b16 %v492, %v491
    %v510 = vpack.c.b16 %v494, %v493
    %527 = vmatpush.bf16.msra.mxu0 %v502
    %528 = vmatpush.bf16.msra.mxu0 %v501
    %529 = vmatpush.bf16.msra.mxu0 %v500
    %530 = vmatpush.bf16.msra.mxu0 %v499
    %531 = vmatpush.bf16.msra.mxu0 %v498
    %532 = vmatpush.bf16.msra.mxu0 %v497
    %533 = vmatpush.bf16.msra.mxu0 %v496
    %534 = vmatpush.bf16.msra.mxu0 %v495
    %535 = vmatmul.bf16.gmra.mxu0 %v397
    %v536 = vpop.f32.mrf.mxu0
    %v537 = vadd.f32 0.0, %v536
    %v538 = vpop.f32.mrf.mxu0
    %v539 = vadd.f32 0.0, %v538
    %540 = vdwg.mxu0
    %541 = vmatpush.bf16.msra.mxu0 %v510
    %542 = vmatpush.bf16.msra.mxu0 %v509
    %543 = vmatpush.bf16.msra.mxu0 %v508
    %544 = vmatpush.bf16.msra.mxu0 %v507
    %545 = vmatpush.bf16.msra.mxu0 %v506
    %546 = vmatpush.bf16.msra.mxu0 %v505
    %547 = vmatpush.bf16.msra.mxu0 %v504
    %548 = vmatpush.bf16.msra.mxu0 %v503
    %549 = vmatmul.bf16.gmra.mxu0 %v398
    %v550 = vpop.f32.mrf.mxu0
    %v551 = vadd.f32 %v537, %v550
    %v552 = vpop.f32.mrf.mxu0
    %v553 = vadd.f32 %v539, %v552
    %554 = vdwg.mxu0
    %555 = vst [vmem:[#allocation8] sm:$0xff] %v551
    %556 = vst [vmem:[#allocation8 + $0x8] sm:$0xff] %v553
    // Predicated region
    $region26: #{feed_forward.1} parent=1 // pred_check
      _
    $region27: #{feed_forward.1} parent=1 // pred_check_branch
      %558 = sbr.rel (0) target = $region29
    $region28: #{feed_forward.1} parent=1 // pred_region
      %560 = vsyncadd [#allocation4], 0
      %s561 = sshll.u32 [#allocation8], 4
      %s562 = int_to_ptr.vmem [resolvable:$true] %s561
      %s563 = sshll.u32 %s3, 4
      %s564 = int_to_ptr.hbm [resolvable:$true] %s563
      %569 = dma.vmem_to_hbm [thread:$0]  %s562, 256, %s564, [#allocation4], 128, 128, 8
    $region29: #{feed_forward.1} parent=1 // pred_fallthru
      _
    // Predicated region
    $region30: #{feed_forward.1} parent=1 // pred_check
      _
    $region31: #{feed_forward.1} parent=1 // pred_check_branch
      %571 = sbr.rel (0) target = $region33
    $region32: #{feed_forward.1} parent=1 // pred_region
      %573 = dma.done [#allocation4], 256
    $region33: #{feed_forward.1} parent=1 // pred_fallthru
      _
    %574 = vsyncpa [#allocation3], 1
    %575 = vsyncpa [#allocation6], 1
    %576 = vsyncpa [#allocation4], 1

</llo_original>
